<compile_context>
chip_gen: v7x
topology: tpu7x:2x2x1
jax: 0.10.0
libtpu: 0.0.40
codegen_flags: <defaults>
</compile_context>

<pallas_src>
from functools import partial

import jax
import jax.numpy as jnp
from jax.experimental import pallas as pl
from jax.experimental.pallas import tpu as pltpu


def _round_up(x, m):
    return (x + m - 1) // m * m


# ----------------------------- Pallas kernel --------------------------------

def _update_edge_kernel(g_ref, he_ref, w1b_ref, w2_ref, b2_ref, w3_ref,
                        scale_ref, shift_ref, out_ref):
    he = he_ref[...]                                       # bf16 (tile_rows, L)

    # Layer 1: edge-feature matmul (MXU, f32 accum) + precomputed node term
    # G = h_V[src] @ W1a + h_V[dst] @ W1c + b1 (gathered in the wrapper).
    x = (jnp.dot(he, w1b_ref[...], preferred_element_type=jnp.float32)
         + g_ref[...].astype(jnp.float32))
    x = jax.nn.gelu(x, approximate=True)                   # tanh -> EUP slot

    # Layer 2
    x = jnp.dot(x.astype(w2_ref.dtype), w2_ref[...],
                preferred_element_type=jnp.float32) + b2_ref[...]
    x = jax.nn.gelu(x, approximate=True)

    # Layer 3 with the BatchNorm scale pre-folded into W3's output columns.
    x = jnp.dot(x.astype(w3_ref.dtype), w3_ref[...],
                preferred_element_type=jnp.float32)

    # Residual + BatchNorm1d (eval) epilogue: out = he*scale + x + shift'.
    out_ref[...] = (he.astype(jnp.float32) * scale_ref[...] + x
                    + shift_ref[...]).astype(out_ref.dtype)


# ------------------------------- wrapper -------------------------------------

@partial(jax.jit, static_argnames=("tile_rows", "io_dtype"))
def update_edge_pallas(h_V, h_E, T_ts, edge_idx, batch_id, params, *,
                       tile_rows=2048, io_dtype=jnp.bfloat16):
    """Forward of UpdateEdge. T_ts / batch_id are unused (as in the PyTorch forward)."""
    del T_ts, batch_id
    E, H = h_E.shape

    # Lane packing: PACK edges per 128-lane row so loads/stores are lane-dense.
    # (If 128 % H != 0 we fall back to PACK=1: still correct, but lane-sparse —
    #  a known perf cliff rather than a silent one.)
    PACK = 128 // H if 128 % H == 0 else 1
    L = PACK * H

    R = pl.cdiv(E, PACK)                           # packed rows holding real edges
    # Big tiles amortise per-step overhead; cap so the grid keeps >=2 steps
    # (v7x has 2 TensorCores); rows are a multiple of 8 sublanes.
    tile_rows = max(8, min(tile_rows, _round_up(pl.cdiv(R, 2), 8)))
    tile_rows = _round_up(tile_rows, 8)
    R_pad = _round_up(R, tile_rows)
    E_pad = R_pad * PACK

    src_idx, dst_idx = edge_idx[0], edge_idx[1]

    # Node-side share of layer 1, computed once per node (N*H — tiny), then
    # gathered + summed per edge in ONE fused XLA op -> a single bf16 stream.
    h_V16 = h_V.astype(io_dtype)
    w1 = params["w1"].astype(io_dtype)                              # (3H, H)
    P = jnp.dot(h_V16, w1[:H], preferred_element_type=jnp.float32)  # (N, H)
    Q = jnp.dot(h_V16, w1[2 * H:], preferred_element_type=jnp.float32)
    G = P[src_idx] + Q[dst_idx] + params["b1"].astype(jnp.float32)  # (E, H)

    def pack_edges(x):                             # (E, H) -> (R_pad, L) row-major
        x = x.astype(io_dtype)
        x = jnp.pad(x, ((0, E_pad - E), (0, 0)))
        return x.reshape(R_pad, L)

    # Block-diagonal weights: packed_x @ kron(I_PACK, W) == per-edge x @ W.
    eye = jnp.eye(PACK, dtype=io_dtype)

    def bd(w):                                     # (H, H) -> (L, L) block-diag
        return jnp.kron(eye, w.astype(io_dtype))

    def tile_vec(v):                               # (H,) -> (1, L) f32
        return jnp.tile(v.astype(jnp.float32), PACK).reshape(1, L)

    # Fold BatchNorm1d (eval) into per-channel scale/shift, then fold the scale
    # into W3's output columns and b3 into the shift.
    eps = 1e-5
    bn_scale = params["bn_gamma"] / jnp.sqrt(params["bn_var"] + eps)    # (H,)
    bn_shift = params["bn_beta"] - params["bn_mean"] * bn_scale         # (H,)
    w3_scaled = params["w3"] * bn_scale[None, :]
    shift_p = params["b3"] * bn_scale + bn_shift

    grid = (R_pad // tile_rows,)
    edge_spec = pl.BlockSpec((tile_rows, L), lambda i: (i, 0))
    mat_spec = pl.BlockSpec((L, L), lambda i: (0, 0))
    vec_spec = pl.BlockSpec((1, L), lambda i: (0, 0))

    itemsize = jnp.dtype(io_dtype).itemsize
    cost = pl.CostEstimate(
        # MXU work actually issued (includes the block-diagonal zero blocks).
        flops=6 * R_pad * L * L,                   # 3 matmuls x 2*L*L per packed row
        transcendentals=2 * R_pad * L,             # 2 tanh-GELUs per element
        bytes_accessed=3 * R_pad * L * itemsize + 3 * L * L * itemsize,
    )

    out_packed = pl.pallas_call(
        _update_edge_kernel,
        out_shape=jax.ShapeDtypeStruct((R_pad, L), io_dtype),
        grid_spec=pltpu.PrefetchScalarGridSpec(
            num_scalar_prefetch=0,
            grid=grid,
            in_specs=[
                edge_spec, edge_spec,              # G, h_E (packed)
                mat_spec,                          # W1b
                mat_spec, vec_spec,                # W2, b2
                mat_spec,                          # W3 * bn_scale
                vec_spec, vec_spec,                # bn_scale, shift'
            ],
            out_specs=edge_spec,
        ),
        compiler_params=pltpu.CompilerParams(
            dimension_semantics=("parallel",),
            vmem_limit_bytes=32 * 1024 * 1024),    # safe on v5e/v6e/v7x
        cost_estimate=cost,
    )(pack_edges(G), pack_edges(h_E),
      bd(w1[H:2 * H]),
      bd(params["w2"]), tile_vec(params["b2"]),
      bd(w3_scaled),
      tile_vec(bn_scale), tile_vec(shift_p))

    # Unpack lanes back to (E, H) and drop the row padding.
    return out_packed.reshape(E_pad, H)[:E]


# -------------------------- pure-JAX reference -------------------------------

def update_edge_ref(h_V, h_E, edge_idx, params, io_dtype=jnp.bfloat16):
    """True module semantics (exact-erf GELU, f32 math) on the same
    bf16-quantized inputs/weights the kernel consumes."""
    q = lambda x: x.astype(io_dtype).astype(jnp.float32)
    src, dst = edge_idx[0], edge_idx[1]
    h_EV = jnp.concatenate([q(h_V)[src], q(h_E), q(h_V)[dst]], axis=-1)
    x = jax.nn.gelu(h_EV @ q(params["w1"]) + params["b1"], approximate=False)
    x = jax.nn.gelu(x @ q(params["w2"]) + params["b2"], approximate=False)
    x = x @ q(params["w3"]) + params["b3"]
    y = q(h_E) + x
    eps = 1e-5
    scale = params["bn_gamma"] / jnp.sqrt(params["bn_var"] + eps)
    return (y - params["bn_mean"]) * scale + params["bn_beta"]


# --------------------------------- main --------------------------------------

def _init_params(key, num_hidden):
    H = num_hidden
    ks = jax.random.split(key, 9)
    s = 0.1
    return {
        # Linear weights stored as (in, out); biases as (out,).
        "w1": s * jax.random.normal(ks[0], (3 * H, H), jnp.float32),
        "b1": s * jax.random.normal(ks[1], (H,), jnp.float32),
        "w2": s * jax.random.normal(ks[2], (H, H), jnp.float32),
        "b2": s * jax.random.normal(ks[3], (H,), jnp.float32),
        "w3": s * jax.random.normal(ks[4], (H, H), jnp.float32),
        "b3": s * jax.random.normal(ks[5], (H,), jnp.float32),
        # BatchNorm1d params + running stats (eval mode).
        "bn_gamma": 1.0 + s * jax.random.normal(ks[6], (H,), jnp.float32),
        "bn_beta": s * jax.random.normal(ks[7], (H,), jnp.float32),
        "bn_mean": jnp.zeros((H,), jnp.float32),
        "bn_var": jnp.ones((H,), jnp.float32),
        # TODO(synk): pred_quat Linear(H, 8) exists in __init__ but is unused in forward.
    }


if __name__ == "__main__":
    num_hidden = 32
    num_nodes = 24
    num_edges = 200          # not a multiple of the tile -> exercises padding path

    key = jax.random.PRNGKey(0)
    k_hv, k_he, k_idx, k_p = jax.random.split(key, 4)

    h_V = jax.random.normal(k_hv, (num_nodes, num_hidden), jnp.float32)
    h_E = jax.random.normal(k_he, (num_edges, num_hidden), jnp.float32)
    edge_idx = jax.random.randint(k_idx, (2, num_edges), 0, num_nodes, jnp.int32)
    T_ts = None                                        # unused by forward
    batch_id = jnp.zeros((num_nodes,), jnp.int32)      # unused by forward
    params = _init_params(k_p, num_hidden)

    out = update_edge_pallas(h_V, h_E, T_ts, edge_idx, batch_id, params)
    out = jax.block_until_ready(out)

    ref = update_edge_ref(h_V, h_E, edge_idx, params)
    assert out.shape == (num_edges, num_hidden)
    err = jnp.max(jnp.abs(out.astype(jnp.float32) - ref))
    # Tolerance covers bf16 I/O + intermediates and tanh-vs-erf GELU (<~3e-3).
    assert err < 4e-2, f"mismatch vs pure-JAX reference: {err}"

    print("KERNEL_OK")
</pallas_src>

<mosaic_0001>
module attributes {stable_mosaic.version = 11 : i64} {
  func.func @_update_edge_kernel(%arg0: i32, %arg1: memref<32x128xbf16, #tpu.memory_space<vmem>>, %arg2: memref<32x128xbf16, #tpu.memory_space<vmem>>, %arg3: memref<128x128xbf16, #tpu.memory_space<vmem>>, %arg4: memref<128x128xbf16, #tpu.memory_space<vmem>>, %arg5: memref<1x128xf32, #tpu.memory_space<vmem>>, %arg6: memref<128x128xbf16, #tpu.memory_space<vmem>>, %arg7: memref<1x128xf32, #tpu.memory_space<vmem>>, %arg8: memref<1x128xf32, #tpu.memory_space<vmem>>, %arg9: memref<32x128xbf16, #tpu.memory_space<vmem>>) attributes {dimension_semantics = [#tpu.dimension_semantics<parallel>], iteration_bounds = array<i64: 2>, scalar_prefetch = 0 : i64, scratch_operands = 0 : i64, tpu.core_type = #tpu.core_type<tc>, window_params = [{transform_indices = @transform_0, window_bounds = array<i64: 32, 128>}, {transform_indices = @transform_1, window_bounds = array<i64: 32, 128>}, {pipeline_mode = #tpu.pipeline_mode<synchronous>, transform_indices = @transform_2, window_bounds = array<i64: 128, 128>}, {pipeline_mode = #tpu.pipeline_mode<synchronous>, transform_indices = @transform_3, window_bounds = array<i64: 128, 128>}, {pipeline_mode = #tpu.pipeline_mode<synchronous>, transform_indices = @transform_4, window_bounds = array<i64: 1, 128>}, {pipeline_mode = #tpu.pipeline_mode<synchronous>, transform_indices = @transform_5, window_bounds = array<i64: 128, 128>}, {pipeline_mode = #tpu.pipeline_mode<synchronous>, transform_indices = @transform_6, window_bounds = array<i64: 1, 128>}, {pipeline_mode = #tpu.pipeline_mode<synchronous>, transform_indices = @transform_7, window_bounds = array<i64: 1, 128>}, {transform_indices = @transform_8, window_bounds = array<i64: 32, 128>}]} {
    %c0 = arith.constant 0 : index
    %c0_0 = arith.constant 0 : index
    %0 = vector.load %arg2[%c0, %c0_0] : memref<32x128xbf16, #tpu.memory_space<vmem>>, vector<32x128xbf16>
    %c0_1 = arith.constant 0 : index
    %c0_2 = arith.constant 0 : index
    %1 = vector.load %arg3[%c0_1, %c0_2] : memref<128x128xbf16, #tpu.memory_space<vmem>>, vector<128x128xbf16>
    %cst = arith.constant dense<0.000000e+00> : vector<32x128xf32>
    %2 = tpu.matmul %0, %1, %cst {dimension_numbers = #tpu.dot_dimension_numbers<[1], [0], [0], [1], [0, 0, 1, 1], [], []>} : vector<32x128xbf16>, vector<128x128xbf16>, vector<32x128xf32> -> vector<32x128xf32>
    %c0_3 = arith.constant 0 : index
    %c0_4 = arith.constant 0 : index
    %3 = vector.load %arg1[%c0_3, %c0_4] : memref<32x128xbf16, #tpu.memory_space<vmem>>, vector<32x128xbf16>
    %4 = arith.extf %3 : vector<32x128xbf16> to vector<32x128xf32>
    %5 = arith.addf %2, %4 : vector<32x128xf32>
    %6 = arith.mulf %5, %5 : vector<32x128xf32>
    %7 = arith.mulf %5, %6 : vector<32x128xf32>
    %cst_5 = arith.constant 4.471500e-02 : f32
    %8 = vector.broadcast %cst_5 : f32 to vector<32x128xf32>
    %9 = arith.mulf %8, %7 : vector<32x128xf32>
    %10 = arith.addf %5, %9 : vector<32x128xf32>
    %cst_6 = arith.constant 0.797884583 : f32
    %11 = vector.broadcast %cst_6 : f32 to vector<32x128xf32>
    %12 = arith.mulf %11, %10 : vector<32x128xf32>
    %13 = math.tanh %12 : vector<32x128xf32>
    %cst_7 = arith.constant 1.000000e+00 : f32
    %14 = vector.broadcast %cst_7 : f32 to vector<32x128xf32>
    %15 = arith.addf %14, %13 : vector<32x128xf32>
    %cst_8 = arith.constant 5.000000e-01 : f32
    %16 = vector.broadcast %cst_8 : f32 to vector<32x128xf32>
    %17 = arith.mulf %16, %15 : vector<32x128xf32>
    %18 = arith.mulf %5, %17 : vector<32x128xf32>
    %19 = arith.truncf %18 : vector<32x128xf32> to vector<32x128xbf16>
    %c0_9 = arith.constant 0 : index
    %c0_10 = arith.constant 0 : index
    %20 = vector.load %arg4[%c0_9, %c0_10] : memref<128x128xbf16, #tpu.memory_space<vmem>>, vector<128x128xbf16>
    %cst_11 = arith.constant dense<0.000000e+00> : vector<32x128xf32>
    %21 = tpu.matmul %19, %20, %cst_11 {dimension_numbers = #tpu.dot_dimension_numbers<[1], [0], [0], [1], [0, 0, 1, 1], [], []>} : vector<32x128xbf16>, vector<128x128xbf16>, vector<32x128xf32> -> vector<32x128xf32>
    %c0_12 = arith.constant 0 : index
    %c0_13 = arith.constant 0 : index
    %22 = vector.load %arg5[%c0_12, %c0_13] : memref<1x128xf32, #tpu.memory_space<vmem>>, vector<1x128xf32>
    %23 = vector.broadcast %22 : vector<1x128xf32> to vector<32x128xf32>
    %24 = arith.addf %21, %23 : vector<32x128xf32>
    %25 = arith.mulf %24, %24 : vector<32x128xf32>
    %26 = arith.mulf %24, %25 : vector<32x128xf32>
    %cst_14 = arith.constant 4.471500e-02 : f32
    %27 = vector.broadcast %cst_14 : f32 to vector<32x128xf32>
    %28 = arith.mulf %27, %26 : vector<32x128xf32>
    %29 = arith.addf %24, %28 : vector<32x128xf32>
    %cst_15 = arith.constant 0.797884583 : f32
    %30 = vector.broadcast %cst_15 : f32 to vector<32x128xf32>
    %31 = arith.mulf %30, %29 : vector<32x128xf32>
    %32 = math.tanh %31 : vector<32x128xf32>
    %cst_16 = arith.constant 1.000000e+00 : f32
    %33 = vector.broadcast %cst_16 : f32 to vector<32x128xf32>
    %34 = arith.addf %33, %32 : vector<32x128xf32>
    %cst_17 = arith.constant 5.000000e-01 : f32
    %35 = vector.broadcast %cst_17 : f32 to vector<32x128xf32>
    %36 = arith.mulf %35, %34 : vector<32x128xf32>
    %37 = arith.mulf %24, %36 : vector<32x128xf32>
    %38 = arith.truncf %37 : vector<32x128xf32> to vector<32x128xbf16>
    %c0_18 = arith.constant 0 : index
    %c0_19 = arith.constant 0 : index
    %39 = vector.load %arg6[%c0_18, %c0_19] : memref<128x128xbf16, #tpu.memory_space<vmem>>, vector<128x128xbf16>
    %cst_20 = arith.constant dense<0.000000e+00> : vector<32x128xf32>
    %40 = tpu.matmul %38, %39, %cst_20 {dimension_numbers = #tpu.dot_dimension_numbers<[1], [0], [0], [1], [0, 0, 1, 1], [], []>} : vector<32x128xbf16>, vector<128x128xbf16>, vector<32x128xf32> -> vector<32x128xf32>
    %41 = arith.extf %0 : vector<32x128xbf16> to vector<32x128xf32>
    %c0_21 = arith.constant 0 : index
    %c0_22 = arith.constant 0 : index
    %42 = vector.load %arg7[%c0_21, %c0_22] : memref<1x128xf32, #tpu.memory_space<vmem>>, vector<1x128xf32>
    %43 = vector.broadcast %42 : vector<1x128xf32> to vector<32x128xf32>
    %44 = arith.mulf %41, %43 : vector<32x128xf32>
    %45 = arith.addf %44, %40 : vector<32x128xf32>
    %c0_23 = arith.constant 0 : index
    %c0_24 = arith.constant 0 : index
    %46 = vector.load %arg8[%c0_23, %c0_24] : memref<1x128xf32, #tpu.memory_space<vmem>>, vector<1x128xf32>
    %47 = vector.broadcast %46 : vector<1x128xf32> to vector<32x128xf32>
    %48 = arith.addf %45, %47 : vector<32x128xf32>
    %49 = arith.truncf %48 : vector<32x128xf32> to vector<32x128xbf16>
    %c0_25 = arith.constant 0 : index
    %c0_26 = arith.constant 0 : index
    %50 = vector.load %arg9[%c0_25, %c0_26] : memref<32x128xbf16, #tpu.memory_space<vmem>>, vector<32x128xbf16>
    tpu.vector_store %arg9[%c0_25, %c0_26], %49 {strides = array<i32>} : memref<32x128xbf16, #tpu.memory_space<vmem>>, vector<32x128xbf16>,
    return
  }
  func.func @transform_0(%arg0: i32) -> (i32, i32) {
    %c0_i32 = arith.constant 0 : i32
    %c0_i32_0 = arith.constant 0 : i32
    return %arg0, %c0_i32 : i32, i32
  }
  func.func @transform_1(%arg0: i32) -> (i32, i32) {
    %c0_i32 = arith.constant 0 : i32
    %c0_i32_0 = arith.constant 0 : i32
    return %arg0, %c0_i32 : i32, i32
  }
  func.func @transform_2(%arg0: i32) -> (i32, i32) {
    %c0_i32 = arith.constant 0 : i32
    %c0_i32_0 = arith.constant 0 : i32
    %c0_i32_1 = arith.constant 0 : i32
    return %c0_i32, %c0_i32_0 : i32, i32
  }
  func.func @transform_3(%arg0: i32) -> (i32, i32) {
    %c0_i32 = arith.constant 0 : i32
    %c0_i32_0 = arith.constant 0 : i32
    %c0_i32_1 = arith.constant 0 : i32
    return %c0_i32, %c0_i32_0 : i32, i32
  }
  func.func @transform_4(%arg0: i32) -> (i32, i32) {
    %c0_i32 = arith.constant 0 : i32
    %c0_i32_0 = arith.constant 0 : i32
    %c0_i32_1 = arith.constant 0 : i32
    return %c0_i32, %c0_i32_0 : i32, i32
  }
  func.func @transform_5(%arg0: i32) -> (i32, i32) {
    %c0_i32 = arith.constant 0 : i32
    %c0_i32_0 = arith.constant 0 : i32
    %c0_i32_1 = arith.constant 0 : i32
    return %c0_i32, %c0_i32_0 : i32, i32
  }
  func.func @transform_6(%arg0: i32) -> (i32, i32) {
    %c0_i32 = arith.constant 0 : i32
    %c0_i32_0 = arith.constant 0 : i32
    %c0_i32_1 = arith.constant 0 : i32
    return %c0_i32, %c0_i32_0 : i32, i32
  }
  func.func @transform_7(%arg0: i32) -> (i32, i32) {
    %c0_i32 = arith.constant 0 : i32
    %c0_i32_0 = arith.constant 0 : i32
    %c0_i32_1 = arith.constant 0 : i32
    return %c0_i32, %c0_i32_0 : i32, i32
  }
  func.func @transform_8(%arg0: i32) -> (i32, i32) {
    %c0_i32 = arith.constant 0 : i32
    %c0_i32_0 = arith.constant 0 : i32
    return %arg0, %c0_i32 : i32, i32
  }
}

</mosaic_0001>

<llo_original>
// kernel: tile.23
$region0: #{tile.23}
  #allocation0 [shape = 's32[1]{0}', space=sflag, size = 0x4, scoped, tag = 'scoped memory for tile.23']
  %s0 = inlined_call_operand.vmem [shape: f32[32], index: 0, kind: input, shape index: {}]
  %s1 = inlined_call_operand.vmem [shape: f32[4,32], index: 1, kind: output, shape index: {}]
  // Predicated region
  $region2: #{tile.23} parent=0 // pred_check
    _
  $region3: #{tile.23} parent=0 // pred_check_branch
    %3 = sbr.rel (0) target = $region5
  $region4: #{tile.23} parent=0 // pred_region
    _
  $region5: #{tile.23} parent=0 // pred_fallthru
    _
  %v4 = vld [vmem:[%s0] ss:$0 sm:$0xff]
  %5 = vst [vmem:[%s1] sm:$0xf] %v4

// kernel: tile.24
$region0: #{tile.24}
  %s0 = inlined_call_operand.vmem [shape: f32[4,32], index: 0, kind: input, shape index: {}]
  %s1 = inlined_call_operand.vmem [shape: f32[1,128], index: 1, kind: output, shape index: {}]
  $region1: #{tile.24} parent=0
    #allocation0 [shape = 'u8[4096]{0}', space=vmem, size = 0x1000, scoped, tag = 'scoped mem for output reshape']
    #allocation1 [shape = 'u8[4096]{0}', space=vmem, size = 0x1000, scoped, tag = 'scoped mem for input reshape']
    %s3 = sshllo.u32 0, 4
    %v4 = vld [vmem:[%s0] sm:%s3]
    %5 = vst [vmem:[#allocation1] sm:%s3] %v4
    %v6 = vld [vmem:[#allocation1] sm:$0x1]
    %vm7 = vcmask 261120
    %8 = vst.msk [vmem:[#allocation0] sm:$0x1] %vm7, %v6
    %s9 = scalar_lea.vmem [#allocation1], 3
    %v10 = vld [vmem:[%s9] sm:$0x1]
    %11 = vrot.lane.b32.xlu0 %v10, 96
    %v12 = vpop.permute.xlu0 %11
    %vm13 = vcmask 1048320
    %14 = vst.msk [vmem:[#allocation0] sm:$0x1] %vm13, %v12
    %s15 = scalar_lea.vmem [#allocation1], 2
    %v16 = vld [vmem:[%s15] sm:$0x1]
    %17 = vrot.lane.b32.xlu0 %v16, 64
    %v18 = vpop.permute.xlu0 %17
    %vm19 = vcmask 785920
    %20 = vst.msk [vmem:[#allocation0] sm:$0x1] %vm19, %v18
    %s21 = scalar_lea.vmem [#allocation1], 1
    %v22 = vld [vmem:[%s21] sm:$0x1]
    %23 = vrot.lane.b32.xlu0 %v22, 32
    %v24 = vpop.permute.xlu0 %23
    %vm25 = vcmask 523520
    %26 = vst.msk [vmem:[#allocation0] sm:$0x1] %vm25, %v24
    %s28 = sshllo.u32 0, 1
    %v30 = vld [vmem:[#allocation0] sm:%s28]
    %s31 = sshllo.u32 0, 1
    %32 = vst [vmem:[%s1] sm:%s31] %v30

// kernel: update_edge_pallas.1
$region0: #{update_edge_pallas.1}
  #allocation0 [shape = 'u32[]', space=smem, size = 0x4, offset = 0x4, fixed_abs, tag = 'smem constant byte address 0x4 - core index']
  #allocation1 [shape = 'u32[144,128]{1,0:T(1,128)}', space=vmem, size = 0x12000, scoped, tag = 'internal scratch']
  %s0 = inlined_call_operand.vmem [shape: bf16[64,128], index: 0, kind: input, shape index: {}]
  %s1 = inlined_call_operand.vmem [shape: bf16[64,128], index: 1, kind: input, shape index: {}]
  %s2 = inlined_call_operand.vmem [shape: bf16[128,128], index: 2, kind: input, shape index: {}]
  %s3 = inlined_call_operand.vmem [shape: bf16[128,128], index: 3, kind: input, shape index: {}]
  %s4 = inlined_call_operand.vmem [shape: f32[1,128], index: 4, kind: input, shape index: {}]
  %s5 = inlined_call_operand.vmem [shape: bf16[128,128], index: 5, kind: input, shape index: {}]
  %s6 = inlined_call_operand.vmem [shape: f32[1,128], index: 6, kind: input, shape index: {}]
  %s7 = inlined_call_operand.vmem [shape: f32[1,128], index: 7, kind: input, shape index: {}]
  %s8 = inlined_call_operand.vmem [shape: bf16[64,128], index: 8, kind: output, shape index: {}]
  %s9 = sld [smem:[#allocation0]]
  $region65: #{update_edge_pallas.1} parent=0
    _
  %s11 = ssub.s32 1, %s9
  %s12 = scalar_select 0, %s11, %s9
  loop: start=0, step=1, limit=4
  $region2: #{update_edge_pallas.1} parent=0 // loop_pre_header
    _
  $region3: #{update_edge_pallas.1} parent=0 // loop_header
    %s14 = sphi 0, %s18
    %p15 = scmp.ge.s32.totalorder %s14, 4
    %s24 = sphi 0, %s26
    %s27 = sphi 0, %s24
    %s28 = sphi 0, %s27
    %s44 = sphi 0, %s28
    %s50 = sphi 0, %s52
    %s53 = sphi 0, %s50
    %s54 = sphi 0, %s53
    %s70 = sphi 0, %s54
    %s74 = sphi 0, %s74
    %s76 = sphi 0, %s74
    %s77 = sphi 0, %s76
    %s91 = sphi 0, %s77
    %s95 = sphi 0, %s95
    %s97 = sphi 0, %s95
    %s98 = sphi 0, %s97
    %s112 = sphi 0, %s98
    %s116 = sphi 0, %s116
    %s118 = sphi 0, %s116
    %s119 = sphi 0, %s118
    %s133 = sphi 0, %s119
    %s137 = sphi 0, %s137
    %s139 = sphi 0, %s137
    %s140 = sphi 0, %s139
    %s154 = sphi 0, %s140
    %s158 = sphi 0, %s158
    %s160 = sphi 0, %s158
    %s161 = sphi 0, %s160
    %s175 = sphi 0, %s161
    %s179 = sphi 0, %s179
    %s181 = sphi 0, %s179
    %s182 = sphi 0, %s181
    %s196 = sphi 0, %s182
    %s202 = sphi 0, %s204
    %s205 = sphi 0, %s202
    %s206 = sphi 0, %s205
    %s222 = sphi 0, %s206
  $region4: #{update_edge_pallas.1} parent=0 // loop_header_branch
    %17 = sbr.rel (%p15) target = $region8
  $region5: #{update_edge_pallas.1} parent=0 // loop_body
    %s19 = ssub.s32 %s14, 1
    %s20 = ssub.s32 %s14, 2
    %s21 = sadd.s32 %s14, 1
    %s22 = ssub.s32 %s14, %s21
    %p23 = scmp.eq.s32.totalorder %s22, 0
    %s25 = sadd.s32 %s24, 1
    %s26 = scalar_select %p23, %s24, %s25
    %p29 = pneg %p23
    %p30 = scmp.eq.s32.totalorder %s14, 1
    %p31 = por %p29, %p30
    %p32 = scmp.ne.s32.totalorder %s24, %s27
    %p33 = scmp.eq.s32.totalorder %s14, 0
    %p34 = por %p32, %p33
    %p35 = scmp.ne.s32.totalorder %s24, %s27
    %p36 = scmp.eq.s32.totalorder %s19, 1
    %p37 = por %p35, %p36
    %p38 = scmp.ne.s32.totalorder %s27, %s28
    %p39 = scmp.eq.s32.totalorder %s19, 0
    %p40 = por %p38, %p39
    %p41 = scmp.ne.s32.totalorder %s27, %s28
    %p42 = scmp.eq.s32.totalorder %s20, 1
    %p43 = por %p41, %p42
    %p45 = scmp.ne.s32.totalorder %s28, %s44
    %p46 = scmp.eq.s32.totalorder %s20, 0
    %p47 = por %p45, %p46
    %s48 = ssub.s32 %s14, %s21
    %p49 = scmp.eq.s32.totalorder %s48, 0
    %s51 = sadd.s32 %s50, 1
    %s52 = scalar_select %p49, %s50, %s51
    %p55 = pneg %p49
    %p56 = scmp.eq.s32.totalorder %s14, 1
    %p57 = por %p55, %p56
    %p58 = scmp.ne.s32.totalorder %s50, %s53
    %p59 = scmp.eq.s32.totalorder %s14, 0
    %p60 = por %p58, %p59
    %p61 = scmp.ne.s32.totalorder %s50, %s53
    %p62 = scmp.eq.s32.totalorder %s19, 1
    %p63 = por %p61, %p62
    %p64 = scmp.ne.s32.totalorder %s53, %s54
    %p65 = scmp.eq.s32.totalorder %s19, 0
    %p66 = por %p64, %p65
    %p67 = scmp.ne.s32.totalorder %s53, %s54
    %p68 = scmp.eq.s32.totalorder %s20, 1
    %p69 = por %p67, %p68
    %p71 = scmp.ne.s32.totalorder %s54, %s70
    %p72 = scmp.eq.s32.totalorder %s20, 0
    %p73 = por %p71, %p72
    %s75 = sadd.s32 %s74, 1
    %p78 = scmp.eq.s32.totalorder %s14, 1
    %p79 = scmp.ne.s32.totalorder %s74, %s76
    %p80 = scmp.eq.s32.totalorder %s14, 0
    %p81 = por %p79, %p80
    %p82 = scmp.ne.s32.totalorder %s74, %s76
    %p83 = scmp.eq.s32.totalorder %s19, 1
    %p84 = por %p82, %p83
    %p85 = scmp.ne.s32.totalorder %s76, %s77
    %p86 = scmp.eq.s32.totalorder %s19, 0
    %p87 = por %p85, %p86
    %p88 = scmp.ne.s32.totalorder %s76, %s77
    %p89 = scmp.eq.s32.totalorder %s20, 1
    %p90 = por %p88, %p89
    %p92 = scmp.ne.s32.totalorder %s77, %s91
    %p93 = scmp.eq.s32.totalorder %s20, 0
    %p94 = por %p92, %p93
    %s96 = sadd.s32 %s95, 1
    %p99 = scmp.eq.s32.totalorder %s14, 1
    %p100 = scmp.ne.s32.totalorder %s95, %s97
    %p101 = scmp.eq.s32.totalorder %s14, 0
    %p102 = por %p100, %p101
    %p103 = scmp.ne.s32.totalorder %s95, %s97
    %p104 = scmp.eq.s32.totalorder %s19, 1
    %p105 = por %p103, %p104
    %p106 = scmp.ne.s32.totalorder %s97, %s98
    %p107 = scmp.eq.s32.totalorder %s19, 0
    %p108 = por %p106, %p107
    %p109 = scmp.ne.s32.totalorder %s97, %s98
    %p110 = scmp.eq.s32.totalorder %s20, 1
    %p111 = por %p109, %p110
    %p113 = scmp.ne.s32.totalorder %s98, %s112
    %p114 = scmp.eq.s32.totalorder %s20, 0
    %p115 = por %p113, %p114
    %s117 = sadd.s32 %s116, 1
    %p120 = scmp.eq.s32.totalorder %s14, 1
    %p121 = scmp.ne.s32.totalorder %s116, %s118
    %p122 = scmp.eq.s32.totalorder %s14, 0
    %p123 = por %p121, %p122
    %p124 = scmp.ne.s32.totalorder %s116, %s118
    %p125 = scmp.eq.s32.totalorder %s19, 1
    %p126 = por %p124, %p125
    %p127 = scmp.ne.s32.totalorder %s118, %s119
    %p128 = scmp.eq.s32.totalorder %s19, 0
    %p129 = por %p127, %p128
    %p130 = scmp.ne.s32.totalorder %s118, %s119
    %p131 = scmp.eq.s32.totalorder %s20, 1
    %p132 = por %p130, %p131
    %p134 = scmp.ne.s32.totalorder %s119, %s133
    %p135 = scmp.eq.s32.totalorder %s20, 0
    %p136 = por %p134, %p135
    %s138 = sadd.s32 %s137, 1
    %p141 = scmp.eq.s32.totalorder %s14, 1
    %p142 = scmp.ne.s32.totalorder %s137, %s139
    %p143 = scmp.eq.s32.totalorder %s14, 0
    %p144 = por %p142, %p143
    %p145 = scmp.ne.s32.totalorder %s137, %s139
    %p146 = scmp.eq.s32.totalorder %s19, 1
    %p147 = por %p145, %p146
    %p148 = scmp.ne.s32.totalorder %s139, %s140
    %p149 = scmp.eq.s32.totalorder %s19, 0
    %p150 = por %p148, %p149
    %p151 = scmp.ne.s32.totalorder %s139, %s140
    %p152 = scmp.eq.s32.totalorder %s20, 1
    %p153 = por %p151, %p152
    %p155 = scmp.ne.s32.totalorder %s140, %s154
    %p156 = scmp.eq.s32.totalorder %s20, 0
    %p157 = por %p155, %p156
    %s159 = sadd.s32 %s158, 1
    %p162 = scmp.eq.s32.totalorder %s14, 1
    %p163 = scmp.ne.s32.totalorder %s158, %s160
    %p164 = scmp.eq.s32.totalorder %s14, 0
    %p165 = por %p163, %p164
    %p166 = scmp.ne.s32.totalorder %s158, %s160
    %p167 = scmp.eq.s32.totalorder %s19, 1
    %p168 = por %p166, %p167
    %p169 = scmp.ne.s32.totalorder %s160, %s161
    %p170 = scmp.eq.s32.totalorder %s19, 0
    %p171 = por %p169, %p170
    %p172 = scmp.ne.s32.totalorder %s160, %s161
    %p173 = scmp.eq.s32.totalorder %s20, 1
    %p174 = por %p172, %p173
    %p176 = scmp.ne.s32.totalorder %s161, %s175
    %p177 = scmp.eq.s32.totalorder %s20, 0
    %p178 = por %p176, %p177
    %s180 = sadd.s32 %s179, 1
    %p183 = scmp.eq.s32.totalorder %s14, 1
    %p184 = scmp.ne.s32.totalorder %s179, %s181
    %p185 = scmp.eq.s32.totalorder %s14, 0
    %p186 = por %p184, %p185
    %p187 = scmp.ne.s32.totalorder %s179, %s181
    %p188 = scmp.eq.s32.totalorder %s19, 1
    %p189 = por %p187, %p188
    %p190 = scmp.ne.s32.totalorder %s181, %s182
    %p191 = scmp.eq.s32.totalorder %s19, 0
    %p192 = por %p190, %p191
    %p193 = scmp.ne.s32.totalorder %s181, %s182
    %p194 = scmp.eq.s32.totalorder %s20, 1
    %p195 = por %p193, %p194
    %p197 = scmp.ne.s32.totalorder %s182, %s196
    %p198 = scmp.eq.s32.totalorder %s20, 0
    %p199 = por %p197, %p198
    %s200 = ssub.s32 %s14, %s21
    %p201 = scmp.eq.s32.totalorder %s200, 0
    %s203 = sadd.s32 %s202, 1
    %s204 = scalar_select %p201, %s202, %s203
    %p207 = pneg %p201
    %p208 = scmp.eq.s32.totalorder %s14, 1
    %p209 = por %p207, %p208
    %p210 = scmp.ne.s32.totalorder %s202, %s205
    %p211 = scmp.eq.s32.totalorder %s14, 0
    %p212 = por %p210, %p211
    %p213 = scmp.ne.s32.totalorder %s202, %s205
    %p214 = scmp.eq.s32.totalorder %s19, 1
    %p215 = por %p213, %p214
    %p216 = scmp.ne.s32.totalorder %s205, %s206
    %p217 = scmp.eq.s32.totalorder %s19, 0
    %p218 = por %p216, %p217
    %p219 = scmp.ne.s32.totalorder %s205, %s206
    %p220 = scmp.eq.s32.totalorder %s20, 1
    %p221 = por %p219, %p220
    %p223 = scmp.ne.s32.totalorder %s206, %s222
    %p224 = scmp.eq.s32.totalorder %s20, 0
    %p225 = por %p223, %p224
    %p226 = scmp.le.s32.totalorder 1, %s14
    %p227 = scmp.lt.s32.totalorder %s14, 3
    %p228 = pnand %p226, %p227
    %p229 = pneg %p228
    // Predicated region
    $region9: #{update_edge_pallas.1} parent=5 // pred_check
      _
    $region10: #{update_edge_pallas.1} parent=5 // pred_check_branch
      %231 = sbr.rel (%p228) target = $region12
    $region11: #{update_edge_pallas.1} parent=5 // pred_region
      %s232 = ssub.s32 %s14, 1
      // Predicated region
      $region13: #{update_edge_pallas.1} parent=11 // pred_check
        %p233 = pneg %p87
      $region14: #{update_edge_pallas.1} parent=11 // pred_check_branch
        %235 = sbr.rel (%p233) target = $region16
      $region15: #{update_edge_pallas.1} parent=11 // pred_region
        _
      $region16: #{update_edge_pallas.1} parent=11 // pred_fallthru
        _
      // Predicated region
      $region17: #{update_edge_pallas.1} parent=11 // pred_check
        %p236 = pneg %p108
      $region18: #{update_edge_pallas.1} parent=11 // pred_check_branch
        %238 = sbr.rel (%p236) target = $region20
      $region19: #{update_edge_pallas.1} parent=11 // pred_region
        _
      $region20: #{update_edge_pallas.1} parent=11 // pred_fallthru
        _
      // Predicated region
      $region21: #{update_edge_pallas.1} parent=11 // pred_check
        %p239 = pneg %p129
      $region22: #{update_edge_pallas.1} parent=11 // pred_check_branch
        %241 = sbr.rel (%p239) target = $region24
      $region23: #{update_edge_pallas.1} parent=11 // pred_region
        _
      $region24: #{update_edge_pallas.1} parent=11 // pred_fallthru
        _
      // Predicated region
      $region25: #{update_edge_pallas.1} parent=11 // pred_check
        %p242 = pneg %p150
      $region26: #{update_edge_pallas.1} parent=11 // pred_check_branch
        %244 = sbr.rel (%p242) target = $region28
      $region27: #{update_edge_pallas.1} parent=11 // pred_region
        _
      $region28: #{update_edge_pallas.1} parent=11 // pred_fallthru
        _
      // Predicated region
      $region29: #{update_edge_pallas.1} parent=11 // pred_check
        %p245 = pneg %p171
      $region30: #{update_edge_pallas.1} parent=11 // pred_check_branch
        %247 = sbr.rel (%p245) target = $region32
      $region31: #{update_edge_pallas.1} parent=11 // pred_region
        _
      $region32: #{update_edge_pallas.1} parent=11 // pred_fallthru
        _
      // Predicated region
      $region33: #{update_edge_pallas.1} parent=11 // pred_check
        %p248 = pneg %p192
      $region34: #{update_edge_pallas.1} parent=11 // pred_check_branch
        %250 = sbr.rel (%p248) target = $region36
      $region35: #{update_edge_pallas.1} parent=11 // pred_region
        _
      $region36: #{update_edge_pallas.1} parent=11 // pred_fallthru
        _
    $region12: #{update_edge_pallas.1} parent=5 // pred_fallthru
      _
    %p251 = scmp.lt.s32.totalorder %s14, 2
    // Predicated region
    $region37: #{update_edge_pallas.1} parent=5 // pred_check
      %p252 = pneg %p251
    $region38: #{update_edge_pallas.1} parent=5 // pred_check_branch
      %254 = sbr.rel (%p252) target = $region40
    $region39: #{update_edge_pallas.1} parent=5 // pred_region
      // Predicated region
      $region41: #{update_edge_pallas.1} parent=39 // pred_check
        %p255 = pneg %p34
      $region42: #{update_edge_pallas.1} parent=39 // pred_check_branch
        %257 = sbr.rel (%p255) target = $region44
      $region43: #{update_edge_pallas.1} parent=39 // pred_region
        %s258 = smul.u32 4, %s14
        %p259 = scmp.lt.s32.totalorder %s258, 7
        %s260 = scalar_select %p259, %s258, 7
        %s261 = smul.addr %s260, 4
        %s262 = scalar_lea.vmem %s0, %s261
        %s263 = smul.u32 4, %s14
      $region44: #{update_edge_pallas.1} parent=39 // pred_fallthru
        _
      // Predicated region
      $region45: #{update_edge_pallas.1} parent=39 // pred_check
        %p264 = pneg %p60
      $region46: #{update_edge_pallas.1} parent=39 // pred_check_branch
        %266 = sbr.rel (%p264) target = $region48
      $region47: #{update_edge_pallas.1} parent=39 // pred_region
        %s267 = smul.u32 4, %s14
        %p268 = scmp.lt.s32.totalorder %s267, 7
        %s269 = scalar_select %p268, %s267, 7
        %s270 = smul.addr %s269, 4
        %s271 = scalar_lea.vmem %s1, %s270
        %s272 = smul.u32 4, %s14
      $region48: #{update_edge_pallas.1} parent=39 // pred_fallthru
        _
    $region40: #{update_edge_pallas.1} parent=5 // pred_fallthru
      _
    %p273 = scmp.le.s32.totalorder 1, %s14
    %p274 = scmp.lt.s32.totalorder %s14, 3
    %p275 = pnand %p273, %p274
    %p276 = pneg %p275
    // Predicated region
    $region49: #{update_edge_pallas.1} parent=5 // pred_check
      _
    $region50: #{update_edge_pallas.1} parent=5 // pred_check_branch
      %278 = sbr.rel (%p275) target = $region52
    $region51: #{update_edge_pallas.1} parent=5 // pred_region
      %s279 = ssub.s32 %s14, 1
      %s280 = smul.u32 4, %s19
      %p281 = scmp.lt.s32.totalorder %s280, 7
      %s282 = scalar_select %p281, %s280, 7
      %s283 = smul.addr %s282, 4
      %s284 = scalar_lea.vmem %s0, %s283
      %p285 = pneg %p40
      %p286 = pneg %p37
      %s287 = smul.u32 4, %s19
      %p288 = scmp.lt.s32.totalorder %s287, 7
      %s289 = scalar_select %p288, %s287, 7
      %s290 = smul.addr %s289, 4
      %s291 = scalar_lea.vmem %s1, %s290
      %p292 = pneg %p66
      %p293 = pneg %p63
      %p294 = pneg %p87
      %p295 = pneg %p84
      %p296 = pneg %p108
      %p297 = pneg %p105
      %p298 = pneg %p129
      %p299 = pneg %p126
      %p300 = pneg %p150
      %p301 = pneg %p147
      %p302 = pneg %p171
      %p303 = pneg %p168
      %p304 = pneg %p192
      %p305 = pneg %p189
      %p306 = pneg %p218
      %p307 = pneg %p215
      %s308 = smul.u32 4, %s19
      %p309 = scmp.lt.s32.totalorder %s308, 7
      %s310 = scalar_select %p309, %s308, 7
      %s311 = smul.addr %s310, 4
      %s312 = scalar_lea.vmem %s8, %s311
      %s313 = smul.u32 4, %s19
      %p314 = scmp.lt.s32.totalorder %s313, 7
      %s315 = scalar_select %p314, %s313, 7
      %s316 = smul.addr %s315, 4
      %s317 = scalar_lea.vmem %s0, %s316
      %s318 = smul.u32 4, %s19
      %s319 = smul.u32 4, %s19
      %p320 = scmp.lt.s32.totalorder %s319, 7
      %s321 = scalar_select %p320, %s319, 7
      %s322 = smul.addr %s321, 4
      %s323 = scalar_lea.vmem %s1, %s322
      %s324 = smul.u32 4, %s19
      %s325 = smul.u32 4, %s19
      %p326 = scmp.lt.s32.totalorder %s325, 7
      %s327 = scalar_select %p326, %s325, 7
      %s328 = smul.addr %s327, 4
      %s329 = scalar_lea.vmem %s8, %s328
      %s330 = smul.u32 4, %s19
      %v332 = vld [vmem:[%s323] sm:$0xf]
      %v333 = vld [vmem:[%s323 + $0x4] sm:$0xf]
      %v334 = vld [vmem:[%s323 + $0x8] sm:$0xf]
      %v335 = vld [vmem:[%s323 + $0xc] sm:$0xf]
      %v336 = vld [vmem:[%s2] sm:$0xf]
      %v337 = vld [vmem:[%s2 + $0x4] sm:$0xf]
      %v338 = vld [vmem:[%s2 + $0x8] sm:$0xf]
      %v339 = vld [vmem:[%s2 + $0xc] sm:$0xf]
      %v340 = vld [vmem:[%s2 + $0x10] sm:$0xf]
      %v341 = vld [vmem:[%s2 + $0x14] sm:$0xf]
      %v342 = vld [vmem:[%s2 + $0x18] sm:$0xf]
      %v343 = vld [vmem:[%s2 + $0x1c] sm:$0xf]
      %v344 = vld [vmem:[%s2 + $0x20] sm:$0xf]
      %v345 = vld [vmem:[%s2 + $0x24] sm:$0xf]
      %v346 = vld [vmem:[%s2 + $0x28] sm:$0xf]
      %v347 = vld [vmem:[%s2 + $0x2c] sm:$0xf]
      %v348 = vld [vmem:[%s2 + $0x30] sm:$0xf]
      %v349 = vld [vmem:[%s2 + $0x34] sm:$0xf]
      %v350 = vld [vmem:[%s2 + $0x38] sm:$0xf]
      %v351 = vld [vmem:[%s2 + $0x3c] sm:$0xf]
      %v352 = vld [vmem:[%s317] sm:$0xf]
      %v353 = vld [vmem:[%s317 + $0x4] sm:$0xf]
      %v354 = vld [vmem:[%s317 + $0x8] sm:$0xf]
      %v355 = vld [vmem:[%s317 + $0xc] sm:$0xf]
      %v356 = vunpack.c.l.bf16 %v352
      %v357 = vunpack.c.l.bf16 %v353
      %v358 = vunpack.c.l.bf16 %v354
      %v359 = vunpack.c.l.bf16 %v355
      %v364 = vunpack.c.l.b16 %v332
      %v365 = vunpack.c.l.b16 %v333
      %v366 = vunpack.c.l.b16 %v334
      %v367 = vunpack.c.l.b16 %v335
      %v368 = vpack.c.b16 %v365, %v364
      %v369 = vpack.c.b16 %v367, %v366
      %v388 = vunpack.c.l.b16 %v336
      %v389 = vunpack.c.l.b16 %v337
      %v390 = vunpack.c.l.b16 %v338
      %v391 = vunpack.c.l.b16 %v339
      %v392 = vunpack.c.l.b16 %v340
      %v393 = vunpack.c.l.b16 %v341
      %v394 = vunpack.c.l.b16 %v342
      %v395 = vunpack.c.l.b16 %v343
      %v396 = vunpack.c.l.b16 %v344
      %v397 = vunpack.c.l.b16 %v345
      %v398 = vunpack.c.l.b16 %v346
      %v399 = vunpack.c.l.b16 %v347
      %v400 = vunpack.c.l.b16 %v348
      %v401 = vunpack.c.l.b16 %v349
      %v402 = vunpack.c.l.b16 %v350
      %v403 = vunpack.c.l.b16 %v351
      %v404 = vpack.c.b16 %v389, %v388
      %v405 = vpack.c.b16 %v391, %v390
      %v406 = vpack.c.b16 %v393, %v392
      %v407 = vpack.c.b16 %v395, %v394
      %v408 = vpack.c.b16 %v397, %v396
      %v409 = vpack.c.b16 %v399, %v398
      %v410 = vpack.c.b16 %v401, %v400
      %v411 = vpack.c.b16 %v403, %v402
      %420 = vmatprep.subr.bf16.mxu0 0
      %421 = vmatpush1.bf16.msra.mxu0 %v404
      %422 = vmatprep.subr.bf16.mxu0 0
      %423 = vmatpush1.bf16.msra.mxu0 %v405
      %424 = vmatprep.subr.bf16.mxu0 0
      %425 = vmatpush1.bf16.msra.mxu0 %v406
      %426 = vmatprep.subr.bf16.mxu0 0
      %427 = vmatpush1.bf16.msra.mxu0 %v407
      %428 = vmatprep.subr.bf16.mxu0 0
      %429 = vmatpush1.bf16.msra.mxu0 %v408
      %430 = vmatprep.subr.bf16.mxu0 0
      %431 = vmatpush1.bf16.msra.mxu0 %v409
      %432 = vmatprep.subr.bf16.mxu0 0
      %433 = vmatpush1.bf16.msra.mxu0 %v410
      %434 = vmatprep.subr.bf16.mxu0 0
      %435 = vmatpush1.bf16.msra.mxu0 %v411
      %436 = vmatprep.subr.bf16.mxu0 0
      %437 = vmatpush1.bf16.msra.mxu0 0
      %438 = vmatprep.subr.bf16.mxu0 0
      %439 = vmatpush1.bf16.msra.mxu0 0
      %440 = vmatprep.subr.bf16.mxu0 0
      %441 = vmatpush1.bf16.msra.mxu0 0
      %442 = vmatprep.subr.bf16.mxu0 0
      %443 = vmatpush1.bf16.msra.mxu0 0
      %444 = vmatprep.subr.bf16.mxu0 0
      %445 = vmatpush1.bf16.msra.mxu0 0
      %446 = vmatprep.subr.bf16.mxu0 0
      %447 = vmatpush1.bf16.msra.mxu0 0
      %448 = vmatprep.subr.bf16.mxu0 0
      %449 = vmatpush1.bf16.msra.mxu0 0
      %450 = vmatprep.subr.bf16.mxu0 0
      %451 = vmatpush1.bf16.msra.mxu0 0
      %452 = vmatprep.mubr.bf16.mxu0 0
      %453 = vmatmul.mubr.bf16.gmra.mrb[0].mxu0 %v368
      %v454 = vpop.f32.mrb[0].mxu0
      %v455 = vadd.f32 %v356, %v454
      %v456 = vpop.f32.mrb[0].mxu0
      %v457 = vpop.f32.mrb[0].mxu0
      %v458 = vadd.f32 %v357, %v457
      %v459 = vpop.f32.mrb[0].mxu0
      %460 = vmatprep.mubr.bf16.mxu0 0
      %461 = vmatmul.mubr.bf16.gmra.mrb[0].mxu0 %v369
      %v462 = vpop.f32.mrb[0].mxu0
      %v463 = vadd.f32 %v358, %v462
      %v464 = vpop.f32.mrb[0].mxu0
      %v465 = vpop.f32.mrb[0].mxu0
      %v466 = vadd.f32 %v359, %v465
      %v467 = vpop.f32.mrb[0].mxu0
      %468 = vdwg.mxu0
      %v469 = vmul.f32 %v455, %v455
      %v470 = vmul.f32 %v458, %v458
      %v471 = vmul.f32 %v463, %v463
      %v472 = vmul.f32 %v466, %v466
      %v473 = vmul.f32 %v455, %v469
      %v474 = vmul.f32 %v458, %v470
      %v475 = vmul.f32 %v463, %v471
      %v476 = vmul.f32 %v466, %v472
      %v477 = vmul.f32 %v473, 0.044715
      %v478 = vmul.f32 %v474, 0.044715
      %v479 = vmul.f32 %v475, 0.044715
      %v480 = vmul.f32 %v476, 0.044715
      %v481 = vadd.f32 %v455, %v477
      %v482 = vadd.f32 %v458, %v478
      %v483 = vadd.f32 %v463, %v479
      %v484 = vadd.f32 %v466, %v480
      %v485 = vmul.f32 %v481, 0.7978846
      %v486 = vmul.f32 %v482, 0.7978846
      %v487 = vmul.f32 %v483, 0.7978846
      %v488 = vmul.f32 %v484, 0.7978846
      %v489 = vtanh.pop %v485
      %v490 = vtanh.pop %v486
      %v491 = vtanh.pop %v487
      %v492 = vtanh.pop %v488
      %v493 = vadd.f32 %v489, 1.0
      %v494 = vadd.f32 %v490, 1.0
      %v495 = vadd.f32 %v491, 1.0
      %v496 = vadd.f32 %v492, 1.0
      %v497 = vmul.f32 %v493, 0.5
      %v498 = vmul.f32 %v494, 0.5
      %v499 = vmul.f32 %v495, 0.5
      %v500 = vmul.f32 %v496, 0.5
      %v501 = vmul.f32 %v455, %v497
      %v502 = vmul.f32 %v458, %v498
      %v503 = vmul.f32 %v463, %v499
      %v504 = vmul.f32 %v466, %v500
      %v505 = vpack.c.bf16 %v502, %v501
      %v506 = vpack.c.bf16 %v504, %v503
      %v507 = vld [vmem:[%s3] sm:$0xf]
      %v508 = vld [vmem:[%s3 + $0x4] sm:$0xf]
      %v509 = vld [vmem:[%s3 + $0x8] sm:$0xf]
      %v510 = vld [vmem:[%s3 + $0xc] sm:$0xf]
      %v511 = vld [vmem:[%s3 + $0x10] sm:$0xf]
      %v512 = vld [vmem:[%s3 + $0x14] sm:$0xf]
      %v513 = vld [vmem:[%s3 + $0x18] sm:$0xf]
      %v514 = vld [vmem:[%s3 + $0x1c] sm:$0xf]
      %v515 = vld [vmem:[%s3 + $0x20] sm:$0xf]
      %v516 = vld [vmem:[%s3 + $0x24] sm:$0xf]
      %v517 = vld [vmem:[%s3 + $0x28] sm:$0xf]
      %v518 = vld [vmem:[%s3 + $0x2c] sm:$0xf]
      %v519 = vld [vmem:[%s3 + $0x30] sm:$0xf]
      %v520 = vld [vmem:[%s3 + $0x34] sm:$0xf]
      %v521 = vld [vmem:[%s3 + $0x38] sm:$0xf]
      %v522 = vld [vmem:[%s3 + $0x3c] sm:$0xf]
      %v523 = vld [vmem:[%s4] sm:$0x1]
      %v525 = vlaneseq
      %v526 = vshrl.u32 %v525, 7
      %v527 = vsub.s32 0, %v526
      %v528 = vrot.slane %v523, %v527
      %v546 = vunpack.c.l.b16 %v507
      %v547 = vunpack.c.l.b16 %v508
      %v548 = vunpack.c.l.b16 %v509
      %v549 = vunpack.c.l.b16 %v510
      %v550 = vunpack.c.l.b16 %v511
      %v551 = vunpack.c.l.b16 %v512
      %v552 = vunpack.c.l.b16 %v513
      %v553 = vunpack.c.l.b16 %v514
      %v554 = vunpack.c.l.b16 %v515
      %v555 = vunpack.c.l.b16 %v516
      %v556 = vunpack.c.l.b16 %v517
      %v557 = vunpack.c.l.b16 %v518
      %v558 = vunpack.c.l.b16 %v519
      %v559 = vunpack.c.l.b16 %v520
      %v560 = vunpack.c.l.b16 %v521
      %v561 = vunpack.c.l.b16 %v522
      %v562 = vpack.c.b16 %v547, %v546
      %v563 = vpack.c.b16 %v549, %v548
      %v564 = vpack.c.b16 %v551, %v550
      %v565 = vpack.c.b16 %v553, %v552
      %v566 = vpack.c.b16 %v555, %v554
      %v567 = vpack.c.b16 %v557, %v556
      %v568 = vpack.c.b16 %v559, %v558
      %v569 = vpack.c.b16 %v561, %v560
      %578 = vmatprep.subr.bf16.mxu0 0
      %579 = vmatpush1.bf16.msra.mxu0 %v562
      %580 = vmatprep.subr.bf16.mxu0 0
      %581 = vmatpush1.bf16.msra.mxu0 %v563
      %582 = vmatprep.subr.bf16.mxu0 0
      %583 = vmatpush1.bf16.msra.mxu0 %v564
      %584 = vmatprep.subr.bf16.mxu0 0
      %585 = vmatpush1.bf16.msra.mxu0 %v565
      %586 = vmatprep.subr.bf16.mxu0 0
      %587 = vmatpush1.bf16.msra.mxu0 %v566
      %588 = vmatprep.subr.bf16.mxu0 0
      %589 = vmatpush1.bf16.msra.mxu0 %v567
      %590 = vmatprep.subr.bf16.mxu0 0
      %591 = vmatpush1.bf16.msra.mxu0 %v568
      %592 = vmatprep.subr.bf16.mxu0 0
      %593 = vmatpush1.bf16.msra.mxu0 %v569
      %594 = vmatprep.subr.bf16.mxu0 0
      %595 = vmatpush1.bf16.msra.mxu0 0
      %596 = vmatprep.subr.bf16.mxu0 0
      %597 = vmatpush1.bf16.msra.mxu0 0
      %598 = vmatprep.subr.bf16.mxu0 0
      %599 = vmatpush1.bf16.msra.mxu0 0
      %600 = vmatprep.subr.bf16.mxu0 0
      %601 = vmatpush1.bf16.msra.mxu0 0
      %602 = vmatprep.subr.bf16.mxu0 0
      %603 = vmatpush1.bf16.msra.mxu0 0
      %604 = vmatprep.subr.bf16.mxu0 0
      %605 = vmatpush1.bf16.msra.mxu0 0
      %606 = vmatprep.subr.bf16.mxu0 0
      %607 = vmatpush1.bf16.msra.mxu0 0
      %608 = vmatprep.subr.bf16.mxu0 0
      %609 = vmatpush1.bf16.msra.mxu0 0
      %610 = vmatprep.mubr.bf16.mxu0 0
      %611 = vmatmul.mubr.bf16.gmra.mrb[0].mxu0 %v505
      %v612 = vpop.f32.mrb[0].mxu0
      %v613 = vadd.f32 %v528, %v612
      %v614 = vpop.f32.mrb[0].mxu0
      %v615 = vpop.f32.mrb[0].mxu0
      %v616 = vadd.f32 %v528, %v615
      %v617 = vpop.f32.mrb[0].mxu0
      %618 = vmatprep.mubr.bf16.mxu0 0
      %619 = vmatmul.mubr.bf16.gmra.mrb[0].mxu0 %v506
      %v620 = vpop.f32.mrb[0].mxu0
      %v621 = vadd.f32 %v528, %v620
      %v622 = vpop.f32.mrb[0].mxu0
      %v623 = vpop.f32.mrb[0].mxu0
      %v624 = vadd.f32 %v528, %v623
      %v625 = vpop.f32.mrb[0].mxu0
      %626 = vdwg.mxu0
      %v627 = vmul.f32 %v613, %v613
      %v628 = vmul.f32 %v616, %v616
      %v629 = vmul.f32 %v621, %v621
      %v630 = vmul.f32 %v624, %v624
      %v631 = vmul.f32 %v613, %v627
      %v632 = vmul.f32 %v616, %v628
      %v633 = vmul.f32 %v621, %v629
      %v634 = vmul.f32 %v624, %v630
      %v635 = vmul.f32 %v631, 0.044715
      %v636 = vmul.f32 %v632, 0.044715
      %v637 = vmul.f32 %v633, 0.044715
      %v638 = vmul.f32 %v634, 0.044715
      %v639 = vadd.f32 %v613, %v635
      %v640 = vadd.f32 %v616, %v636
      %v641 = vadd.f32 %v621, %v637
      %v642 = vadd.f32 %v624, %v638
      %v643 = vmul.f32 %v639, 0.7978846
      %v644 = vmul.f32 %v640, 0.7978846
      %v645 = vmul.f32 %v641, 0.7978846
      %v646 = vmul.f32 %v642, 0.7978846
      %v647 = vtanh.pop %v643
      %v648 = vtanh.pop %v644
      %v649 = vtanh.pop %v645
      %v650 = vtanh.pop %v646
      %v651 = vadd.f32 %v647, 1.0
      %v652 = vadd.f32 %v648, 1.0
      %v653 = vadd.f32 %v649, 1.0
      %v654 = vadd.f32 %v650, 1.0
      %v655 = vmul.f32 %v651, 0.5
      %v656 = vmul.f32 %v652, 0.5
      %v657 = vmul.f32 %v653, 0.5
      %v658 = vmul.f32 %v654, 0.5
      %v659 = vmul.f32 %v613, %v655
      %v660 = vmul.f32 %v616, %v656
      %v661 = vmul.f32 %v621, %v657
      %v662 = vmul.f32 %v624, %v658
      %v663 = vpack.c.bf16 %v660, %v659
      %v664 = vpack.c.bf16 %v662, %v661
      %v665 = vld [vmem:[%s5] sm:$0xf]
      %v666 = vld [vmem:[%s5 + $0x4] sm:$0xf]
      %v667 = vld [vmem:[%s5 + $0x8] sm:$0xf]
      %v668 = vld [vmem:[%s5 + $0xc] sm:$0xf]
      %v669 = vld [vmem:[%s5 + $0x10] sm:$0xf]
      %v670 = vld [vmem:[%s5 + $0x14] sm:$0xf]
      %v671 = vld [vmem:[%s5 + $0x18] sm:$0xf]
      %v672 = vld [vmem:[%s5 + $0x1c] sm:$0xf]
      %v673 = vld [vmem:[%s5 + $0x20] sm:$0xf]
      %v674 = vld [vmem:[%s5 + $0x24] sm:$0xf]
      %v675 = vld [vmem:[%s5 + $0x28] sm:$0xf]
      %v676 = vld [vmem:[%s5 + $0x2c] sm:$0xf]
      %v677 = vld [vmem:[%s5 + $0x30] sm:$0xf]
      %v678 = vld [vmem:[%s5 + $0x34] sm:$0xf]
      %v679 = vld [vmem:[%s5 + $0x38] sm:$0xf]
      %v680 = vld [vmem:[%s5 + $0x3c] sm:$0xf]
      %v697 = vunpack.c.l.b16 %v665
      %v698 = vunpack.c.l.b16 %v666
      %v699 = vunpack.c.l.b16 %v667
      %v700 = vunpack.c.l.b16 %v668
      %v701 = vunpack.c.l.b16 %v669
      %v702 = vunpack.c.l.b16 %v670
      %v703 = vunpack.c.l.b16 %v671
      %v704 = vunpack.c.l.b16 %v672
      %v705 = vunpack.c.l.b16 %v673
      %v706 = vunpack.c.l.b16 %v674
      %v707 = vunpack.c.l.b16 %v675
      %v708 = vunpack.c.l.b16 %v676
      %v709 = vunpack.c.l.b16 %v677
      %v710 = vunpack.c.l.b16 %v678
      %v711 = vunpack.c.l.b16 %v679
      %v712 = vunpack.c.l.b16 %v680
      %v713 = vpack.c.b16 %v698, %v697
      %v714 = vpack.c.b16 %v700, %v699
      %v715 = vpack.c.b16 %v702, %v701
      %v716 = vpack.c.b16 %v704, %v703
      %v717 = vpack.c.b16 %v706, %v705
      %v718 = vpack.c.b16 %v708, %v707
      %v719 = vpack.c.b16 %v710, %v709
      %v720 = vpack.c.b16 %v712, %v711
      %729 = vmatprep.subr.bf16.mxu0 0
      %730 = vmatpush1.bf16.msra.mxu0 %v713
      %731 = vmatprep.subr.bf16.mxu0 0
      %732 = vmatpush1.bf16.msra.mxu0 %v714
      %733 = vmatprep.subr.bf16.mxu0 0
      %734 = vmatpush1.bf16.msra.mxu0 %v715
      %735 = vmatprep.subr.bf16.mxu0 0
      %736 = vmatpush1.bf16.msra.mxu0 %v716
      %737 = vmatprep.subr.bf16.mxu0 0
      %738 = vmatpush1.bf16.msra.mxu0 %v717
      %739 = vmatprep.subr.bf16.mxu0 0
      %740 = vmatpush1.bf16.msra.mxu0 %v718
      %741 = vmatprep.subr.bf16.mxu0 0
      %742 = vmatpush1.bf16.msra.mxu0 %v719
      %743 = vmatprep.subr.bf16.mxu0 0
      %744 = vmatpush1.bf16.msra.mxu0 %v720
      %745 = vmatprep.subr.bf16.mxu0 0
      %746 = vmatpush1.bf16.msra.mxu0 0
      %747 = vmatprep.subr.bf16.mxu0 0
      %748 = vmatpush1.bf16.msra.mxu0 0
      %749 = vmatprep.subr.bf16.mxu0 0
      %750 = vmatpush1.bf16.msra.mxu0 0
      %751 = vmatprep.subr.bf16.mxu0 0
      %752 = vmatpush1.bf16.msra.mxu0 0
      %753 = vmatprep.subr.bf16.mxu0 0
      %754 = vmatpush1.bf16.msra.mxu0 0
      %755 = vmatprep.subr.bf16.mxu0 0
      %756 = vmatpush1.bf16.msra.mxu0 0
      %757 = vmatprep.subr.bf16.mxu0 0
      %758 = vmatpush1.bf16.msra.mxu0 0
      %759 = vmatprep.subr.bf16.mxu0 0
      %760 = vmatpush1.bf16.msra.mxu0 0
      %761 = vmatprep.mubr.bf16.mxu0 0
      %762 = vmatmul.mubr.bf16.gmra.mrb[0].mxu0 %v663
      %v763 = vpop.f32.mrb[0].mxu0
      %v764 = vadd.f32 0.0, %v763
      %v765 = vpop.f32.mrb[0].mxu0
      %v766 = vpop.f32.mrb[0].mxu0
      %v767 = vadd.f32 0.0, %v766
      %v768 = vpop.f32.mrb[0].mxu0
      %769 = vmatprep.mubr.bf16.mxu0 0
      %770 = vmatmul.mubr.bf16.gmra.mrb[0].mxu0 %v664
      %v771 = vpop.f32.mrb[0].mxu0
      %v772 = vadd.f32 0.0, %v771
      %v773 = vpop.f32.mrb[0].mxu0
      %v774 = vpop.f32.mrb[0].mxu0
      %v775 = vadd.f32 0.0, %v774
      %v776 = vpop.f32.mrb[0].mxu0
      %777 = vdwg.mxu0
      %v778 = vunpack.c.l.bf16 %v332
      %v779 = vunpack.c.l.bf16 %v333
      %v780 = vunpack.c.l.bf16 %v334
      %v781 = vunpack.c.l.bf16 %v335
      %v782 = vld [vmem:[%s6] sm:$0x1]
      %v784 = vlaneseq
      %v785 = vshrl.u32 %v784, 7
      %v786 = vsub.s32 0, %v785
      %v787 = vrot.slane %v782, %v786
      %v789 = vmul.f32 %v778, %v787
      %v790 = vmul.f32 %v779, %v787
      %v791 = vmul.f32 %v780, %v787
      %v792 = vmul.f32 %v781, %v787
      %v793 = vadd.f32 %v789, %v764
      %v794 = vadd.f32 %v790, %v767
      %v795 = vadd.f32 %v791, %v772
      %v796 = vadd.f32 %v792, %v775
      %v797 = vld [vmem:[%s7] sm:$0x1]
      %v799 = vlaneseq
      %v800 = vshrl.u32 %v799, 7
      %v801 = vsub.s32 0, %v800
      %v802 = vrot.slane %v797, %v801
      %v804 = vadd.f32 %v793, %v802
      %v805 = vadd.f32 %v794, %v802
      %v806 = vadd.f32 %v795, %v802
      %v807 = vadd.f32 %v796, %v802
      %v808 = vpack.c.bf16 %v805, %v804
      %v809 = vpack.c.bf16 %v807, %v806
      %v812 = vunpack.c.l.b16 %v808
      %v813 = vunpack.c.h.b16 %v808
      %v814 = vunpack.c.l.b16 %v809
      %v815 = vunpack.c.h.b16 %v809
      %v816 = vpack.c.b16 %v812, %v812
      %v817 = vpack.c.b16 %v813, %v813
      %v818 = vpack.c.b16 %v814, %v814
      %v819 = vpack.c.b16 %v815, %v815
      %824 = vst [vmem:[%s329] sm:$0xf] %v816
      %825 = vst [vmem:[%s329 + $0x4] sm:$0xf] %v817
      %826 = vst [vmem:[%s329 + $0x8] sm:$0xf] %v818
      %827 = vst [vmem:[%s329 + $0xc] sm:$0xf] %v819
      %s828 = smul.u32 4, %s19
      %p829 = scmp.lt.s32.totalorder %s828, 7
      %s830 = scalar_select %p829, %s828, 7
      %s831 = smul.addr %s830, 4
      %s832 = scalar_lea.vmem %s8, %s831
      // Predicated region
      $region53: #{update_edge_pallas.1} parent=51 // pred_check
        %p833 = pneg %p215
      $region54: #{update_edge_pallas.1} parent=51 // pred_check_branch
        %835 = sbr.rel (%p833) target = $region56
      $region55: #{update_edge_pallas.1} parent=51 // pred_region
        %s836 = smul.u32 4, %s19
      $region56: #{update_edge_pallas.1} parent=51 // pred_fallthru
        _
    $region52: #{update_edge_pallas.1} parent=5 // pred_fallthru
      _
    %p837 = scmp.le.s32.totalorder 2, %s14
    // Predicated region
    $region57: #{update_edge_pallas.1} parent=5 // pred_check
      %p838 = pneg %p837
    $region58: #{update_edge_pallas.1} parent=5 // pred_check_branch
      %840 = sbr.rel (%p838) target = $region60
    $region59: #{update_edge_pallas.1} parent=5 // pred_region
      %s841 = ssub.s32 %s14, 2
      // Predicated region
      $region61: #{update_edge_pallas.1} parent=59 // pred_check
        %p842 = pneg %p221
      $region62: #{update_edge_pallas.1} parent=59 // pred_check_branch
        %844 = sbr.rel (%p842) target = $region64
      $region63: #{update_edge_pallas.1} parent=59 // pred_region
        %s845 = smul.u32 4, %s20
        %p846 = scmp.lt.s32.totalorder %s845, 7
        %s847 = scalar_select %p846, %s845, 7
        %s848 = smul.addr %s847, 4
        %s849 = scalar_lea.vmem %s8, %s848
      $region64: #{update_edge_pallas.1} parent=59 // pred_fallthru
        _
    $region60: #{update_edge_pallas.1} parent=5 // pred_fallthru
      _
  $region6: #{update_edge_pallas.1} parent=0 // loop_footer
    %s18 = sadd.s32 1, %s14
  $region7: #{update_edge_pallas.1} parent=0 // loop_footer_branch
    %13 = sbr.rel target = $region3
  $region8: #{update_edge_pallas.1} parent=0 // loop_exit
    _

</llo_original>
